<compile_context>
chip_gen: v7x
topology: tpu7x:2x2x1
jax: 0.10.0
libtpu: 0.0.40
codegen_flags: <defaults>
</compile_context>

<pallas_src>
import jax
import jax.numpy as jnp
from jax import lax
from jax.experimental import pallas as pl
from jax.experimental.pallas import tpu as pltpu

EPS = 1e-5  # nn.LayerNorm default eps
VMEM_LIMIT_BYTES = 48 * 1024 * 1024


def _layernorm(x, gamma, beta):
    mu = jnp.mean(x, axis=-1, keepdims=True)
    xc = x - mu                                   # reuse centered x (no re-sub)
    var = jnp.mean(xc * xc, axis=-1, keepdims=True)
    return xc * lax.rsqrt(var + EPS) * gamma + beta


def make_decoder_kernel(l_n, n_prev_list, n_new_list, dim):
    """Fused kernel over all decoder levels + out_ln (levels statically unrolled)."""
    idx_off = [sum(n_prev_list[:i]) for i in range(l_n)]   # static offsets into idx_flat

    def kernel(*refs):
        # refs: [idx_flat(SMEM), h0, ori_h, g_0..g_{l_n-1}(bf16),
        #        down_slab, invdeg_slab, w_stack, p_all, out, up_buf, h_buf]
        idx_ref, h0_ref, ori_ref = refs[0], refs[1], refs[2]
        g_refs = refs[3:3 + l_n]
        down_ref, invdeg_ref, w_ref, p_ref = refs[3 + l_n:7 + l_n]
        out_ref = refs[7 + l_n]
        up_buf, h_buf = refs[8 + l_n], refs[9 + l_n]

        h_out = None
        for i in range(l_n):                       # static unroll over levels
            n_prev, n_new, off = n_prev_list[i], n_new_list[i], idx_off[i]
            src_ref = h0_ref if i == 0 else h_buf  # previous level's h lives here

            # ---- Unpool: new_h[idx[j]] = h[j]; direct row scatter, idx in SMEM ----
            up_buf[0:n_new, :] = jnp.zeros((n_new, dim), jnp.float32)

            def scatter_row(j, carry, src_ref=src_ref, off=off):
                tgt = idx_ref[off + j]                               # scalar from SMEM
                up_buf[pl.ds(tgt, 1), :] = src_ref[pl.ds(j, 1), :]   # 1-row dynamic store
                return carry

            lax.fori_loop(0, n_prev, scatter_row, 0)
            h_up = up_buf[0:n_new, :]

            # ---- h1 = inp_LN(down_out + unpooled h) ----
            h1 = _layernorm(down_ref[i, 0:n_new, :] + h_up,
                            p_ref[5 * i + 0:5 * i + 1, :],
                            p_ref[5 * i + 1:5 * i + 2, :])

            # ---- aggregation: norm_g(g) @ h1 == (G @ h1) * (1/deg) row-wise ----
            #      g is bf16 (MXU-native); exact f32 inv_deg precomputed outside.
            hg = jnp.dot(g_refs[i][...], h1.astype(jnp.bfloat16),
                         preferred_element_type=jnp.float32)
            hg = hg * invdeg_ref[i, 0:n_new, :]

            # ---- GCN: dropout (identity, eval) -> Linear (x @ W.T + b) -> ReLU ----
            h2 = jnp.dot(hg, w_ref[i], preferred_element_type=jnp.float32)
            h2 = jnp.maximum(h2 + p_ref[5 * i + 2:5 * i + 3, :], 0.0)

            # ---- h = LN(h2 + h1) ----
            h_out = _layernorm(h2 + h1,
                               p_ref[5 * i + 3:5 * i + 4, :],
                               p_ref[5 * i + 4:5 * i + 5, :])
            if i < l_n - 1:
                h_buf[0:n_new, :] = h_out      # source rows for next level's unpool

        # ---- final: out = out_ln(h + ori_h) ----
        out_ref[...] = _layernorm(h_out + ori_ref[...],
                                  p_ref[5 * l_n:5 * l_n + 1, :],
                                  p_ref[5 * l_n + 1:5 * l_n + 2, :])

    return kernel


def decoder_forward(params, h, ori_h, down_outs, adj_ms, indices_list):
    """Fused decoder forward. Single pallas_call; everything stays in VMEM."""
    l_n = len(adj_ms)
    n0, dim = ori_h.shape

    # Execution order: level i uses up_idx = l_n - 1 - i.
    g_f32 = [adj_ms[l_n - 1 - i].astype(jnp.float32) for i in range(l_n)]
    idx_list = [indices_list[l_n - 1 - i].astype(jnp.int32).reshape(-1)
                for i in range(l_n)]
    down_list = [down_outs[l_n - 1 - i].astype(jnp.float32) for i in range(l_n)]

    n_new_list = [int(g.shape[0]) for g in g_f32]
    n_prev_list = [int(h.shape[0])] + n_new_list[:-1]

    # Flat SMEM index vector (per-level offsets are static).
    idx_flat = jnp.concatenate(idx_list)

    # bf16 adjacency for the MXU; exact f32 inverse degrees + down_outs packed
    # into single padded slabs (fewer DMA descriptors in the small-graph regime).
    g_bf16 = [g.astype(jnp.bfloat16) for g in g_f32]
    invdeg_slab = jnp.zeros((l_n, n0, 1), jnp.float32)
    down_slab = jnp.zeros((l_n, n0, dim), jnp.float32)
    for i in range(l_n):
        nn_i = n_new_list[i]
        deg = jnp.sum(g_f32[i], axis=1, keepdims=True)
        invdeg_slab = invdeg_slab.at[i, :nn_i, :].set(1.0 / deg)
        down_slab = down_slab.at[i, :nn_i, :].set(down_list[i])

    inputs = ([idx_flat, h.astype(jnp.float32), ori_h.astype(jnp.float32)]
              + g_bf16
              + [down_slab, invdeg_slab, params["w_stack"], params["p_all"]])

    smem = pl.BlockSpec(memory_space=pltpu.MemorySpace.SMEM)
    vmem = pl.BlockSpec(memory_space=pltpu.MemorySpace.VMEM)

    # Advisory cost estimate so XLA schedules around the fused custom call.
    flops = 0
    transcendentals = 0
    for i in range(l_n):
        nn_i = n_new_list[i]
        flops += 2 * nn_i * nn_i * dim + 2 * nn_i * dim * dim + 12 * nn_i * dim
        transcendentals += 2 * nn_i
    flops += 10 * n0 * dim
    transcendentals += n0
    bytes_accessed = sum(int(x.size) * x.dtype.itemsize for x in inputs) + n0 * dim * 4

    # TODO(synk): for large graphs (N >~ a few thousand) switch to a row-tiled grid
    # over g (BlockSpec((tm, N)) with "parallel" dimension_semantics, h1 resident in
    # VMEM scratch) so VMEM stays bounded and v7x's second TensorCore gets work; for
    # batched graphs add a leading parallel batch grid axis instead.
    return pl.pallas_call(
        make_decoder_kernel(l_n, n_prev_list, n_new_list, dim),
        out_shape=jax.ShapeDtypeStruct((n0, dim), jnp.float32),
        in_specs=[smem] + [vmem] * (len(inputs) - 1),
        out_specs=vmem,
        scratch_shapes=[pltpu.VMEM((n0, dim), jnp.float32),   # unpool destination
                        pltpu.VMEM((n0, dim), jnp.float32)],  # current-level h
        compiler_params=pltpu.CompilerParams(vmem_limit_bytes=VMEM_LIMIT_BYTES),
        cost_estimate=pl.CostEstimate(flops=flops,
                                      transcendentals=transcendentals,
                                      bytes_accessed=bytes_accessed),
    )(*inputs)


def init_params(key, l_n, dim):
    bound = 1.0 / float(dim) ** 0.5
    ws, rows = [], []
    for _ in range(l_n):
        key, kw, kb = jax.random.split(key, 3)
        w = jax.random.uniform(kw, (dim, dim), jnp.float32, -bound, bound)
        b = jax.random.uniform(kb, (dim,), jnp.float32, -bound, bound)
        ws.append(w.T)                                          # stored as W.T: x @ W.T
        rows += [jnp.ones((dim,), jnp.float32),                 # ln1 gamma
                 jnp.zeros((dim,), jnp.float32),                # ln1 beta
                 b,                                             # linear bias
                 jnp.ones((dim,), jnp.float32),                 # ln2 gamma
                 jnp.zeros((dim,), jnp.float32)]                # ln2 beta
    rows += [jnp.ones((dim,), jnp.float32),                     # out_ln gamma
             jnp.zeros((dim,), jnp.float32)]                    # out_ln beta
    return dict(w_stack=jnp.stack(ws).astype(jnp.float32),      # (l_n, dim, dim)
                p_all=jnp.stack(rows).astype(jnp.float32))      # (5*l_n + 2, dim)


def reference_forward(params, h, ori_h, down_outs, adj_ms, indices_list):
    """Pure-JAX f32 reference with the module's eval-mode semantics."""
    l_n = len(adj_ms)
    p_all, w_stack = params["p_all"], params["w_stack"]

    def ln(x, g, b):
        mu = jnp.mean(x, -1, keepdims=True)
        var = jnp.mean((x - mu) ** 2, -1, keepdims=True)
        return (x - mu) / jnp.sqrt(var + EPS) * g + b

    h = h.astype(jnp.float32)
    for i in range(l_n):
        up = l_n - 1 - i
        g, idx = adj_ms[up].astype(jnp.float32), indices_list[up]
        new_h = jnp.zeros((g.shape[0], h.shape[1]), jnp.float32).at[idx].set(h)
        h1 = ln(down_outs[up] + new_h, p_all[5 * i], p_all[5 * i + 1])
        gn = g / jnp.sum(g, axis=1, keepdims=True)          # row-normalized: D^-1 G
        hg = gn @ h1
        h2 = jnp.maximum(hg @ w_stack[i] + p_all[5 * i + 2], 0.0)
        h = ln(h2 + h1, p_all[5 * i + 3], p_all[5 * i + 4])
    return ln(h + ori_h, p_all[5 * l_n], p_all[5 * l_n + 1])


if __name__ == "__main__":
    key = jax.random.PRNGKey(0)
    dim = 128                    # lane-dense feature width (last dim = 128 lanes)
    l_n = 2                      # len(ks)
    n0, n1, n2 = 16, 8, 4        # node counts: full graph / level-1 / bottleneck

    params = init_params(key, l_n, dim)
    k = jax.random.split(key, 8)

    def make_adj(kk, n):
        a = jnp.abs(jax.random.normal(kk, (n, n), jnp.float32))
        return a + a.T + jnp.eye(n, dtype=jnp.float32)   # positive degrees

    adj_ms = [make_adj(k[0], n0), make_adj(k[1], n1)]
    indices_list = [jnp.array([0, 1, 3, 5, 8, 10, 12, 15], jnp.int32),
                    jnp.array([1, 2, 4, 6], jnp.int32)]
    down_outs = [jax.random.normal(k[2], (n0, dim), jnp.float32),
                 jax.random.normal(k[3], (n1, dim), jnp.float32)]
    ori_h = jax.random.normal(k[4], (n0, dim), jnp.float32)
    h = jax.random.normal(k[5], (n2, dim), jnp.float32)   # bottleneck features

    out = decoder_forward(params, h, ori_h, down_outs, adj_ms, indices_list)
    out = jax.block_until_ready(out)

    assert out.shape == (n0, dim) and out.dtype == jnp.float32
    assert bool(jnp.all(jnp.isfinite(out)))

    # Loose-tolerance check vs the f32 reference (kernel does the NxN aggregation
    # matmul in bf16, everything else f32).
    ref = reference_forward(params, h, ori_h, down_outs, adj_ms, indices_list)
    max_err = float(jnp.max(jnp.abs(out - ref)))
    assert max_err < 0.1, f"max abs error vs reference: {max_err}"

    print("KERNEL_OK")
</pallas_src>

<mosaic_0001>
module attributes {stable_mosaic.version = 11 : i64} {
  func.func @kernel(%arg0: memref<12xi32, #tpu.memory_space<smem>>, %arg1: memref<4x128xf32, #tpu.memory_space<vmem>>, %arg2: memref<16x128xf32, #tpu.memory_space<vmem>>, %arg3: memref<8x8xbf16, #tpu.memory_space<vmem>>, %arg4: memref<16x16xbf16, #tpu.memory_space<vmem>>, %arg5: memref<2x16x128xf32, #tpu.memory_space<vmem>>, %arg6: memref<2x16x1xf32, #tpu.memory_space<vmem>>, %arg7: memref<2x128x128xf32, #tpu.memory_space<vmem>>, %arg8: memref<12x128xf32, #tpu.memory_space<vmem>>, %arg9: memref<16x128xf32, #tpu.memory_space<vmem>>, %arg10: memref<16x128xf32, #tpu.memory_space<vmem>>, %arg11: memref<16x128xf32, #tpu.memory_space<vmem>>) attributes {dimension_semantics = [], scalar_prefetch = 0 : i64, scratch_operands = 2 : i64, tpu.core_type = #tpu.core_type<tc>} {
    %cst = arith.constant 0.000000e+00 : f32
    %0 = vector.broadcast %cst : f32 to vector<8x128xf32>
    %c0 = arith.constant 0 : index
    %c0_0 = arith.constant 0 : index
    %1 = vector.load %arg10[%c0, %c0_0] : memref<16x128xf32, #tpu.memory_space<vmem>>, vector<8x128xf32>
    tpu.vector_store %arg10[%c0, %c0_0], %0 {strides = array<i32>} : memref<16x128xf32, #tpu.memory_space<vmem>>, vector<8x128xf32>,
    %c0_i32 = arith.constant 0 : i32
    %c4_i32 = arith.constant 4 : i32
    %2 = arith.addi %c0_i32, %c4_i32 : i32
    %c1_i32 = arith.constant 1 : i32
    scf.for %arg12 = %c0_i32 to %2 step %c1_i32  : i32 {
      %c0_i32_84 = arith.constant 0 : i32
      %160 = arith.addi %c0_i32_84, %arg12 : i32
      %161 = arith.index_cast %160 : i32 to index
      %162 = memref.load %arg0[%161] : memref<12xi32, #tpu.memory_space<smem>>
      %163 = arith.index_cast %arg12 : i32 to index
      %c0_85 = arith.constant 0 : index
      %164 = vector.load %arg1[%163, %c0_85] : memref<4x128xf32, #tpu.memory_space<vmem>>, vector<1x128xf32>
      %165 = arith.index_cast %162 : i32 to index
      %c0_86 = arith.constant 0 : index
      %166 = vector.load %arg10[%165, %c0_86] : memref<16x128xf32, #tpu.memory_space<vmem>>, vector<1x128xf32>
      tpu.vector_store %arg10[%165, %c0_86], %164 {strides = array<i32>} : memref<16x128xf32, #tpu.memory_space<vmem>>, vector<1x128xf32>,
    }
    %c4_i32_1 = arith.constant 4 : i32
    %c0_2 = arith.constant 0 : index
    %c0_3 = arith.constant 0 : index
    %3 = vector.load %arg10[%c0_2, %c0_3] : memref<16x128xf32, #tpu.memory_space<vmem>>, vector<8x128xf32>
    %c0_4 = arith.constant 0 : index
    %c0_5 = arith.constant 0 : index
    %c0_6 = arith.constant 0 : index
    %4 = vector.load %arg5[%c0_4, %c0_5, %c0_6] : memref<2x16x128xf32, #tpu.memory_space<vmem>>, vector<1x8x128xf32>
    %5 = vector.shape_cast %4 : vector<1x8x128xf32> to vector<8x128xf32>
    %6 = arith.addf %5, %3 : vector<8x128xf32>
    %c0_7 = arith.constant 0 : index
    %c0_8 = arith.constant 0 : index
    %7 = vector.load %arg8[%c0_7, %c0_8] : memref<12x128xf32, #tpu.memory_space<vmem>>, vector<1x128xf32>
    %c1 = arith.constant 1 : index
    %c0_9 = arith.constant 0 : index
    %8 = vector.load %arg8[%c1, %c0_9] : memref<12x128xf32, #tpu.memory_space<vmem>>, vector<1x128xf32>
    %cst_10 = arith.constant dense<0.000000e+00> : vector<8xf32>
    %9 = vector.multi_reduction <add>, %6, %cst_10 [1] : vector<8x128xf32> to vector<8xf32>
    %10 = vector.shape_cast %9 : vector<8xf32> to vector<8x1xf32>
    %cst_11 = arith.constant 1.280000e+02 : f32
    %11 = vector.broadcast %cst_11 : f32 to vector<8x1xf32>
    %12 = arith.divf %10, %11 : vector<8x1xf32>
    %13 = vector.broadcast %12 : vector<8x1xf32> to vector<8x128xf32>
    %14 = arith.subf %6, %13 : vector<8x128xf32>
    %15 = arith.mulf %14, %14 : vector<8x128xf32>
    %cst_12 = arith.constant dense<0.000000e+00> : vector<8xf32>
    %16 = vector.multi_reduction <add>, %15, %cst_12 [1] : vector<8x128xf32> to vector<8xf32>
    %17 = vector.shape_cast %16 : vector<8xf32> to vector<8x1xf32>
    %cst_13 = arith.constant 1.280000e+02 : f32
    %18 = vector.broadcast %cst_13 : f32 to vector<8x1xf32>
    %19 = arith.divf %17, %18 : vector<8x1xf32>
    %cst_14 = arith.constant 9.99999974E-6 : f32
    %20 = vector.broadcast %cst_14 : f32 to vector<8x1xf32>
    %21 = arith.addf %19, %20 : vector<8x1xf32>
    %22 = math.rsqrt %21 : vector<8x1xf32>
    %23 = vector.broadcast %22 : vector<8x1xf32> to vector<8x128xf32>
    %24 = arith.mulf %14, %23 : vector<8x128xf32>
    %25 = vector.broadcast %7 : vector<1x128xf32> to vector<8x128xf32>
    %26 = arith.mulf %24, %25 : vector<8x128xf32>
    %27 = vector.broadcast %8 : vector<1x128xf32> to vector<8x128xf32>
    %28 = arith.addf %26, %27 : vector<8x128xf32>
    %c0_15 = arith.constant 0 : index
    %c0_16 = arith.constant 0 : index
    %29 = vector.load %arg3[%c0_15, %c0_16] : memref<8x8xbf16, #tpu.memory_space<vmem>>, vector<8x8xbf16>
    %30 = arith.truncf %28 : vector<8x128xf32> to vector<8x128xbf16>
    %cst_17 = arith.constant dense<0.000000e+00> : vector<8x128xf32>
    %31 = tpu.matmul %29, %30, %cst_17 {dimension_numbers = #tpu.dot_dimension_numbers<[1], [0], [0], [1], [0, 0, 1, 1], [], []>} : vector<8x8xbf16>, vector<8x128xbf16>, vector<8x128xf32> -> vector<8x128xf32>
    %c0_18 = arith.constant 0 : index
    %c0_19 = arith.constant 0 : index
    %c0_20 = arith.constant 0 : index
    %32 = vector.load %arg6[%c0_18, %c0_19, %c0_20] : memref<2x16x1xf32, #tpu.memory_space<vmem>>, vector<1x8x1xf32>
    %33 = vector.shape_cast %32 : vector<1x8x1xf32> to vector<8x1xf32>
    %34 = vector.broadcast %33 : vector<8x1xf32> to vector<8x128xf32>
    %35 = arith.mulf %31, %34 : vector<8x128xf32>
    %c0_21 = arith.constant 0 : index
    %c0_22 = arith.constant 0 : index
    %c0_23 = arith.constant 0 : index
    %36 = vector.load %arg7[%c0_21, %c0_22, %c0_23] : memref<2x128x128xf32, #tpu.memory_space<vmem>>, vector<1x128x128xf32>
    %37 = vector.shape_cast %36 : vector<1x128x128xf32> to vector<128x128xf32>
    %cst_24 = arith.constant dense<0.000000e+00> : vector<8x128xf32>
    %38 = tpu.matmul %35, %37, %cst_24 {dimension_numbers = #tpu.dot_dimension_numbers<[1], [0], [0], [1], [0, 0, 1, 1], [], []>} : vector<8x128xf32>, vector<128x128xf32>, vector<8x128xf32> -> vector<8x128xf32>
    %c2 = arith.constant 2 : index
    %c0_25 = arith.constant 0 : index
    %39 = vector.load %arg8[%c2, %c0_25] : memref<12x128xf32, #tpu.memory_space<vmem>>, vector<1x128xf32>
    %40 = vector.broadcast %39 : vector<1x128xf32> to vector<8x128xf32>
    %41 = arith.addf %38, %40 : vector<8x128xf32>
    %cst_26 = arith.constant 0.000000e+00 : f32
    %42 = vector.broadcast %cst_26 : f32 to vector<8x128xf32>
    %43 = arith.maximumf %41, %42 : vector<8x128xf32>
    %44 = arith.addf %43, %28 : vector<8x128xf32>
    %c3 = arith.constant 3 : index
    %c0_27 = arith.constant 0 : index
    %45 = vector.load %arg8[%c3, %c0_27] : memref<12x128xf32, #tpu.memory_space<vmem>>, vector<1x128xf32>
    %c4 = arith.constant 4 : index
    %c0_28 = arith.constant 0 : index
    %46 = vector.load %arg8[%c4, %c0_28] : memref<12x128xf32, #tpu.memory_space<vmem>>, vector<1x128xf32>
    %cst_29 = arith.constant dense<0.000000e+00> : vector<8xf32>
    %47 = vector.multi_reduction <add>, %44, %cst_29 [1] : vector<8x128xf32> to vector<8xf32>
    %48 = vector.shape_cast %47 : vector<8xf32> to vector<8x1xf32>
    %cst_30 = arith.constant 1.280000e+02 : f32
    %49 = vector.broadcast %cst_30 : f32 to vector<8x1xf32>
    %50 = arith.divf %48, %49 : vector<8x1xf32>
    %51 = vector.broadcast %50 : vector<8x1xf32> to vector<8x128xf32>
    %52 = arith.subf %44, %51 : vector<8x128xf32>
    %53 = arith.mulf %52, %52 : vector<8x128xf32>
    %cst_31 = arith.constant dense<0.000000e+00> : vector<8xf32>
    %54 = vector.multi_reduction <add>, %53, %cst_31 [1] : vector<8x128xf32> to vector<8xf32>
    %55 = vector.shape_cast %54 : vector<8xf32> to vector<8x1xf32>
    %cst_32 = arith.constant 1.280000e+02 : f32
    %56 = vector.broadcast %cst_32 : f32 to vector<8x1xf32>
    %57 = arith.divf %55, %56 : vector<8x1xf32>
    %cst_33 = arith.constant 9.99999974E-6 : f32
    %58 = vector.broadcast %cst_33 : f32 to vector<8x1xf32>
    %59 = arith.addf %57, %58 : vector<8x1xf32>
    %60 = math.rsqrt %59 : vector<8x1xf32>
    %61 = vector.broadcast %60 : vector<8x1xf32> to vector<8x128xf32>
    %62 = arith.mulf %52, %61 : vector<8x128xf32>
    %63 = vector.broadcast %45 : vector<1x128xf32> to vector<8x128xf32>
    %64 = arith.mulf %62, %63 : vector<8x128xf32>
    %65 = vector.broadcast %46 : vector<1x128xf32> to vector<8x128xf32>
    %66 = arith.addf %64, %65 : vector<8x128xf32>
    %c0_34 = arith.constant 0 : index
    %c0_35 = arith.constant 0 : index
    %67 = vector.load %arg11[%c0_34, %c0_35] : memref<16x128xf32, #tpu.memory_space<vmem>>, vector<8x128xf32>
    tpu.vector_store %arg11[%c0_34, %c0_35], %66 {strides = array<i32>} : memref<16x128xf32, #tpu.memory_space<vmem>>, vector<8x128xf32>,
    %cst_36 = arith.constant 0.000000e+00 : f32
    %68 = vector.broadcast %cst_36 : f32 to vector<16x128xf32>
    %c0_37 = arith.constant 0 : index
    %c0_38 = arith.constant 0 : index
    %69 = vector.load %arg10[%c0_37, %c0_38] : memref<16x128xf32, #tpu.memory_space<vmem>>, vector<16x128xf32>
    tpu.vector_store %arg10[%c0_37, %c0_38], %68 {strides = array<i32>} : memref<16x128xf32, #tpu.memory_space<vmem>>, vector<16x128xf32>,
    %c0_i32_39 = arith.constant 0 : i32
    %c8_i32 = arith.constant 8 : i32
    %70 = arith.addi %c0_i32_39, %c8_i32 : i32
    %c1_i32_40 = arith.constant 1 : i32
    scf.for %arg12 = %c0_i32_39 to %70 step %c1_i32_40  : i32 {
      %c4_i32_84 = arith.constant 4 : i32
      %160 = arith.addi %c4_i32_84, %arg12 : i32
      %161 = arith.index_cast %160 : i32 to index
      %162 = memref.load %arg0[%161] : memref<12xi32, #tpu.memory_space<smem>>
      %163 = arith.index_cast %arg12 : i32 to index
      %c0_85 = arith.constant 0 : index
      %164 = vector.load %arg11[%163, %c0_85] : memref<16x128xf32, #tpu.memory_space<vmem>>, vector<1x128xf32>
      %165 = arith.index_cast %162 : i32 to index
      %c0_86 = arith.constant 0 : index
      %166 = vector.load %arg10[%165, %c0_86] : memref<16x128xf32, #tpu.memory_space<vmem>>, vector<1x128xf32>
      tpu.vector_store %arg10[%165, %c0_86], %164 {strides = array<i32>} : memref<16x128xf32, #tpu.memory_space<vmem>>, vector<1x128xf32>,
    }
    %c8_i32_41 = arith.constant 8 : i32
    %c0_42 = arith.constant 0 : index
    %c0_43 = arith.constant 0 : index
    %71 = vector.load %arg10[%c0_42, %c0_43] : memref<16x128xf32, #tpu.memory_space<vmem>>, vector<16x128xf32>
    %c1_44 = arith.constant 1 : index
    %c0_45 = arith.constant 0 : index
    %c0_46 = arith.constant 0 : index
    %72 = vector.load %arg5[%c1_44, %c0_45, %c0_46] : memref<2x16x128xf32, #tpu.memory_space<vmem>>, vector<1x16x128xf32>
    %73 = vector.shape_cast %72 : vector<1x16x128xf32> to vector<16x128xf32>
    %74 = arith.addf %73, %71 : vector<16x128xf32>
    %c5 = arith.constant 5 : index
    %c0_47 = arith.constant 0 : index
    %75 = vector.load %arg8[%c5, %c0_47] : memref<12x128xf32, #tpu.memory_space<vmem>>, vector<1x128xf32>
    %c6 = arith.constant 6 : index
    %c0_48 = arith.constant 0 : index
    %76 = vector.load %arg8[%c6, %c0_48] : memref<12x128xf32, #tpu.memory_space<vmem>>, vector<1x128xf32>
    %cst_49 = arith.constant dense<0.000000e+00> : vector<16xf32>
    %77 = vector.multi_reduction <add>, %74, %cst_49 [1] : vector<16x128xf32> to vector<16xf32>
    %78 = vector.shape_cast %77 : vector<16xf32> to vector<16x1xf32>
    %cst_50 = arith.constant 1.280000e+02 : f32
    %79 = vector.broadcast %cst_50 : f32 to vector<16x1xf32>
    %80 = arith.divf %78, %79 : vector<16x1xf32>
    %81 = vector.broadcast %80 : vector<16x1xf32> to vector<16x128xf32>
    %82 = arith.subf %74, %81 : vector<16x128xf32>
    %83 = arith.mulf %82, %82 : vector<16x128xf32>
    %cst_51 = arith.constant dense<0.000000e+00> : vector<16xf32>
    %84 = vector.multi_reduction <add>, %83, %cst_51 [1] : vector<16x128xf32> to vector<16xf32>
    %85 = vector.shape_cast %84 : vector<16xf32> to vector<16x1xf32>
    %cst_52 = arith.constant 1.280000e+02 : f32
    %86 = vector.broadcast %cst_52 : f32 to vector<16x1xf32>
    %87 = arith.divf %85, %86 : vector<16x1xf32>
    %cst_53 = arith.constant 9.99999974E-6 : f32
    %88 = vector.broadcast %cst_53 : f32 to vector<16x1xf32>
    %89 = arith.addf %87, %88 : vector<16x1xf32>
    %90 = math.rsqrt %89 : vector<16x1xf32>
    %91 = vector.broadcast %90 : vector<16x1xf32> to vector<16x128xf32>
    %92 = arith.mulf %82, %91 : vector<16x128xf32>
    %93 = vector.broadcast %75 : vector<1x128xf32> to vector<16x128xf32>
    %94 = arith.mulf %92, %93 : vector<16x128xf32>
    %95 = vector.broadcast %76 : vector<1x128xf32> to vector<16x128xf32>
    %96 = arith.addf %94, %95 : vector<16x128xf32>
    %c0_54 = arith.constant 0 : index
    %c0_55 = arith.constant 0 : index
    %97 = vector.load %arg4[%c0_54, %c0_55] : memref<16x16xbf16, #tpu.memory_space<vmem>>, vector<16x16xbf16>
    %98 = arith.truncf %96 : vector<16x128xf32> to vector<16x128xbf16>
    %cst_56 = arith.constant dense<0.000000e+00> : vector<16x128xf32>
    %99 = tpu.matmul %97, %98, %cst_56 {dimension_numbers = #tpu.dot_dimension_numbers<[1], [0], [0], [1], [0, 0, 1, 1], [], []>} : vector<16x16xbf16>, vector<16x128xbf16>, vector<16x128xf32> -> vector<16x128xf32>
    %c1_57 = arith.constant 1 : index
    %c0_58 = arith.constant 0 : index
    %c0_59 = arith.constant 0 : index
    %100 = vector.load %arg6[%c1_57, %c0_58, %c0_59] : memref<2x16x1xf32, #tpu.memory_space<vmem>>, vector<1x16x1xf32>
    %101 = vector.shape_cast %100 : vector<1x16x1xf32> to vector<16x1xf32>
    %102 = vector.broadcast %101 : vector<16x1xf32> to vector<16x128xf32>
    %103 = arith.mulf %99, %102 : vector<16x128xf32>
    %c1_60 = arith.constant 1 : index
    %c0_61 = arith.constant 0 : index
    %c0_62 = arith.constant 0 : index
    %104 = vector.load %arg7[%c1_60, %c0_61, %c0_62] : memref<2x128x128xf32, #tpu.memory_space<vmem>>, vector<1x128x128xf32>
    %105 = vector.shape_cast %104 : vector<1x128x128xf32> to vector<128x128xf32>
    %cst_63 = arith.constant dense<0.000000e+00> : vector<16x128xf32>
    %106 = tpu.matmul %103, %105, %cst_63 {dimension_numbers = #tpu.dot_dimension_numbers<[1], [0], [0], [1], [0, 0, 1, 1], [], []>} : vector<16x128xf32>, vector<128x128xf32>, vector<16x128xf32> -> vector<16x128xf32>
    %c7 = arith.constant 7 : index
    %c0_64 = arith.constant 0 : index
    %107 = vector.load %arg8[%c7, %c0_64] : memref<12x128xf32, #tpu.memory_space<vmem>>, vector<1x128xf32>
    %108 = vector.broadcast %107 : vector<1x128xf32> to vector<16x128xf32>
    %109 = arith.addf %106, %108 : vector<16x128xf32>
    %cst_65 = arith.constant 0.000000e+00 : f32
    %110 = vector.broadcast %cst_65 : f32 to vector<16x128xf32>
    %111 = arith.maximumf %109, %110 : vector<16x128xf32>
    %112 = arith.addf %111, %96 : vector<16x128xf32>
    %c8 = arith.constant 8 : index
    %c0_66 = arith.constant 0 : index
    %113 = vector.load %arg8[%c8, %c0_66] : memref<12x128xf32, #tpu.memory_space<vmem>>, vector<1x128xf32>
    %c9 = arith.constant 9 : index
    %c0_67 = arith.constant 0 : index
    %114 = vector.load %arg8[%c9, %c0_67] : memref<12x128xf32, #tpu.memory_space<vmem>>, vector<1x128xf32>
    %cst_68 = arith.constant dense<0.000000e+00> : vector<16xf32>
    %115 = vector.multi_reduction <add>, %112, %cst_68 [1] : vector<16x128xf32> to vector<16xf32>
    %116 = vector.shape_cast %115 : vector<16xf32> to vector<16x1xf32>
    %cst_69 = arith.constant 1.280000e+02 : f32
    %117 = vector.broadcast %cst_69 : f32 to vector<16x1xf32>
    %118 = arith.divf %116, %117 : vector<16x1xf32>
    %119 = vector.broadcast %118 : vector<16x1xf32> to vector<16x128xf32>
    %120 = arith.subf %112, %119 : vector<16x128xf32>
    %121 = arith.mulf %120, %120 : vector<16x128xf32>
    %cst_70 = arith.constant dense<0.000000e+00> : vector<16xf32>
    %122 = vector.multi_reduction <add>, %121, %cst_70 [1] : vector<16x128xf32> to vector<16xf32>
    %123 = vector.shape_cast %122 : vector<16xf32> to vector<16x1xf32>
    %cst_71 = arith.constant 1.280000e+02 : f32
    %124 = vector.broadcast %cst_71 : f32 to vector<16x1xf32>
    %125 = arith.divf %123, %124 : vector<16x1xf32>
    %cst_72 = arith.constant 9.99999974E-6 : f32
    %126 = vector.broadcast %cst_72 : f32 to vector<16x1xf32>
    %127 = arith.addf %125, %126 : vector<16x1xf32>
    %128 = math.rsqrt %127 : vector<16x1xf32>
    %129 = vector.broadcast %128 : vector<16x1xf32> to vector<16x128xf32>
    %130 = arith.mulf %120, %129 : vector<16x128xf32>
    %131 = vector.broadcast %113 : vector<1x128xf32> to vector<16x128xf32>
    %132 = arith.mulf %130, %131 : vector<16x128xf32>
    %133 = vector.broadcast %114 : vector<1x128xf32> to vector<16x128xf32>
    %134 = arith.addf %132, %133 : vector<16x128xf32>
    %c0_73 = arith.constant 0 : index
    %c0_74 = arith.constant 0 : index
    %135 = vector.load %arg2[%c0_73, %c0_74] : memref<16x128xf32, #tpu.memory_space<vmem>>, vector<16x128xf32>
    %136 = arith.addf %134, %135 : vector<16x128xf32>
    %c10 = arith.constant 10 : index
    %c0_75 = arith.constant 0 : index
    %137 = vector.load %arg8[%c10, %c0_75] : memref<12x128xf32, #tpu.memory_space<vmem>>, vector<1x128xf32>
    %c11 = arith.constant 11 : index
    %c0_76 = arith.constant 0 : index
    %138 = vector.load %arg8[%c11, %c0_76] : memref<12x128xf32, #tpu.memory_space<vmem>>, vector<1x128xf32>
    %cst_77 = arith.constant dense<0.000000e+00> : vector<16xf32>
    %139 = vector.multi_reduction <add>, %136, %cst_77 [1] : vector<16x128xf32> to vector<16xf32>
    %140 = vector.shape_cast %139 : vector<16xf32> to vector<16x1xf32>
    %cst_78 = arith.constant 1.280000e+02 : f32
    %141 = vector.broadcast %cst_78 : f32 to vector<16x1xf32>
    %142 = arith.divf %140, %141 : vector<16x1xf32>
    %143 = vector.broadcast %142 : vector<16x1xf32> to vector<16x128xf32>
    %144 = arith.subf %136, %143 : vector<16x128xf32>
    %145 = arith.mulf %144, %144 : vector<16x128xf32>
    %cst_79 = arith.constant dense<0.000000e+00> : vector<16xf32>
    %146 = vector.multi_reduction <add>, %145, %cst_79 [1] : vector<16x128xf32> to vector<16xf32>
    %147 = vector.shape_cast %146 : vector<16xf32> to vector<16x1xf32>
    %cst_80 = arith.constant 1.280000e+02 : f32
    %148 = vector.broadcast %cst_80 : f32 to vector<16x1xf32>
    %149 = arith.divf %147, %148 : vector<16x1xf32>
    %cst_81 = arith.constant 9.99999974E-6 : f32
    %150 = vector.broadcast %cst_81 : f32 to vector<16x1xf32>
    %151 = arith.addf %149, %150 : vector<16x1xf32>
    %152 = math.rsqrt %151 : vector<16x1xf32>
    %153 = vector.broadcast %152 : vector<16x1xf32> to vector<16x128xf32>
    %154 = arith.mulf %144, %153 : vector<16x128xf32>
    %155 = vector.broadcast %137 : vector<1x128xf32> to vector<16x128xf32>
    %156 = arith.mulf %154, %155 : vector<16x128xf32>
    %157 = vector.broadcast %138 : vector<1x128xf32> to vector<16x128xf32>
    %158 = arith.addf %156, %157 : vector<16x128xf32>
    %c0_82 = arith.constant 0 : index
    %c0_83 = arith.constant 0 : index
    %159 = vector.load %arg9[%c0_82, %c0_83] : memref<16x128xf32, #tpu.memory_space<vmem>>, vector<16x128xf32>
    tpu.vector_store %arg9[%c0_82, %c0_83], %158 {strides = array<i32>} : memref<16x128xf32, #tpu.memory_space<vmem>>, vector<16x128xf32>,
    return
  }
}

</mosaic_0001>

<llo_original>
// kernel: tpu_custom_call.1
$region0: #{tpu_custom_call.1}
  #allocation0 [shape = 'u32[]', space=smem, size = 0x4, offset = 0x4, fixed_abs, tag = 'smem constant byte address 0x4 - core index']
  #allocation1 [shape = 'u32[144,128]{1,0:T(1,128)}', space=vmem, size = 0x12000, scoped, tag = 'internal scratch']
  #allocation2 [shape = 'f32[16,128]{1,0:T(8,128)}', space=vmem, size = 0x2000, scoped, tag = 'scratch operand']
  #allocation3 [shape = 'f32[16,128]{1,0:T(8,128)}', space=vmem, size = 0x2000, scoped, tag = 'scratch operand']
  %s0 = inlined_call_operand.hbm [shape: s32[12], index: 0, kind: input, shape index: {}]
  %s1 = inlined_call_operand.hbm [shape: f32[4,128], index: 1, kind: input, shape index: {}]
  %s2 = inlined_call_operand.vmem [shape: f32[16,128], index: 2, kind: input, shape index: {}]
  %s3 = inlined_call_operand.hbm [shape: bf16[8,8], index: 3, kind: input, shape index: {}]
  %s4 = inlined_call_operand.hbm [shape: bf16[16,16], index: 4, kind: input, shape index: {}]
  %s5 = inlined_call_operand.vmem [shape: f32[2,16,128], index: 5, kind: input, shape index: {}]
  %s6 = inlined_call_operand.vmem [shape: f32[2,16,1], index: 6, kind: input, shape index: {}]
  %s7 = inlined_call_operand.hbm [shape: f32[2,128,128], index: 7, kind: input, shape index: {}]
  %s8 = inlined_call_operand.vmem [shape: f32[12,128], index: 8, kind: input, shape index: {}]
  %s9 = inlined_call_operand.hbm [shape: f32[16,128], index: 9, kind: output, shape index: {}]
  %s10 = sld [smem:[#allocation0]]
  $region80: #{tpu_custom_call.1} parent=0
    _
  %s12 = ssub.s32 1, %s10
  %s13 = scalar_select 0, %s12, %s10
  $region1: #{tpu_custom_call.1} parent=0
    #allocation4 [shape = 'u8[512]{0}', space=smem, size = 0x200, scoped, tag = 'input window, operand 0, single buffered']
    #allocation5 [shape = 's32[1]{0}', space=sflag, size = 0x4, scoped, tag = 'scoped memory for tpu_custom_call.1']
    #allocation6 [shape = 's32[1]{0}', space=sflag, size = 0x4, scoped, tag = 'scoped memory for tpu_custom_call.1']
    #allocation7 [shape = 's32[1]{0}', space=sflag, size = 0x4, scoped, tag = 'scoped memory for tpu_custom_call.1']
    #allocation8 [shape = 'u8[2048]{0}', space=vmem, size = 0x800, scoped, tag = 'input window, operand 1, single buffered']
    #allocation9 [shape = 'u8[2048]{0}', space=vmem, size = 0x800, scoped, tag = 'input window, operand 3, single buffered']
    #allocation10 [shape = 's32[1]{0}', space=sflag, size = 0x4, scoped, tag = 'scoped memory for tpu_custom_call.1']
    #allocation11 [shape = 'u8[4096]{0}', space=vmem, size = 0x1000, scoped, tag = 'input window, operand 4, single buffered']
    #allocation12 [shape = 'u8[131072]{0}', space=vmem, size = 0x20000, scoped, tag = 'input window, operand 7, single buffered']
    #allocation13 [shape = 's32[1]{0}', space=sflag, size = 0x4, scoped, tag = 'scoped memory for tpu_custom_call.1']
    #allocation14 [shape = 'u8[8192]{0}', space=vmem, size = 0x2000, scoped, tag = 'output window, operand 0, single buffered']
    %14 = vsyncpa [#allocation7], 0
    %15 = vsyncpa [#allocation5], 0
    %16 = vsyncpa [#allocation10], 0
    %17 = vsyncpa [#allocation13], 0
    %18 = vsyncpa [#allocation6], 0
    // Predicated region
    $region2: #{tpu_custom_call.1} parent=1 // pred_check
      _
    $region3: #{tpu_custom_call.1} parent=1 // pred_check_branch
      %20 = sbr.rel (0) target = $region5
    $region4: #{tpu_custom_call.1} parent=1 // pred_region
      %s22 = ssub.s32 16, 16
      %23 = vsyncadd [#allocation7], %s22
      %26 = dma.hbm_to_smem %s0, 16, [#allocation4], [#allocation7]
    $region5: #{tpu_custom_call.1} parent=1 // pred_fallthru
      _
    // Predicated region
    $region6: #{tpu_custom_call.1} parent=1 // pred_check
      _
    $region7: #{tpu_custom_call.1} parent=1 // pred_check_branch
      %28 = sbr.rel (0) target = $region9
    $region8: #{tpu_custom_call.1} parent=1 // pred_region
      %s30 = ssub.s32 64, 64
      %31 = vsyncadd [#allocation5], %s30
      %s33 = sshll.u32 [#allocation8], 4
      %s34 = int_to_ptr.vmem [resolvable:$true] %s33
      %36 = dma.hbm_to_vmem [thread:$0]  %s1, 64, %s34, [#allocation5]
    $region9: #{tpu_custom_call.1} parent=1 // pred_fallthru
      _
    // Predicated region
    $region10: #{tpu_custom_call.1} parent=1 // pred_check
      _
    $region11: #{tpu_custom_call.1} parent=1 // pred_check_branch
      %38 = sbr.rel (0) target = $region13
    $region12: #{tpu_custom_call.1} parent=1 // pred_region
      _
    $region13: #{tpu_custom_call.1} parent=1 // pred_fallthru
      _
    // Predicated region
    $region14: #{tpu_custom_call.1} parent=1 // pred_check
      _
    $region15: #{tpu_custom_call.1} parent=1 // pred_check_branch
      %40 = sbr.rel (0) target = $region17
    $region16: #{tpu_custom_call.1} parent=1 // pred_region
      %s42 = ssub.s32 64, 64
      %43 = vsyncadd [#allocation10], %s42
      %s45 = sshll.u32 [#allocation9], 4
      %s46 = int_to_ptr.vmem [resolvable:$true] %s45
      %48 = dma.hbm_to_vmem [thread:$0]  %s3, 64, %s46, [#allocation10]
    $region17: #{tpu_custom_call.1} parent=1 // pred_fallthru
      _
    // Predicated region
    $region18: #{tpu_custom_call.1} parent=1 // pred_check
      _
    $region19: #{tpu_custom_call.1} parent=1 // pred_check_branch
      %50 = sbr.rel (0) target = $region21
    $region20: #{tpu_custom_call.1} parent=1 // pred_region
      %s52 = ssub.s32 128, 128
      %53 = vsyncadd [#allocation10], %s52
      %s54 = sshll.u32 [#allocation11], 4
      %s55 = int_to_ptr.vmem [resolvable:$true] %s54
      %60 = dma.hbm_to_vmem [thread:$0]  %s4, 128, %s55, [#allocation10], 64, 64, 4
    $region21: #{tpu_custom_call.1} parent=1 // pred_fallthru
      _
    // Predicated region
    $region22: #{tpu_custom_call.1} parent=1 // pred_check
      _
    $region23: #{tpu_custom_call.1} parent=1 // pred_check_branch
      %62 = sbr.rel (0) target = $region25
    $region24: #{tpu_custom_call.1} parent=1 // pred_region
      _
    $region25: #{tpu_custom_call.1} parent=1 // pred_fallthru
      _
    // Predicated region
    $region26: #{tpu_custom_call.1} parent=1 // pred_check
      _
    $region27: #{tpu_custom_call.1} parent=1 // pred_check_branch
      %64 = sbr.rel (0) target = $region29
    $region28: #{tpu_custom_call.1} parent=1 // pred_region
      _
    $region29: #{tpu_custom_call.1} parent=1 // pred_fallthru
      _
    // Predicated region
    $region30: #{tpu_custom_call.1} parent=1 // pred_check
      _
    $region31: #{tpu_custom_call.1} parent=1 // pred_check_branch
      %66 = sbr.rel (0) target = $region33
    $region32: #{tpu_custom_call.1} parent=1 // pred_region
      %s68 = ssub.s32 4096, 4096
      %69 = vsyncadd [#allocation13], %s68
      %s70 = sshll.u32 [#allocation12], 4
      %s71 = int_to_ptr.vmem [resolvable:$true] %s70
      %76 = dma.hbm_to_vmem [thread:$0]  %s7, 4096, %s71, [#allocation13], 128, 128, 8
    $region33: #{tpu_custom_call.1} parent=1 // pred_fallthru
      _
    // Predicated region
    $region34: #{tpu_custom_call.1} parent=1 // pred_check
      _
    $region35: #{tpu_custom_call.1} parent=1 // pred_check_branch
      %78 = sbr.rel (0) target = $region37
    $region36: #{tpu_custom_call.1} parent=1 // pred_region
      _
    $region37: #{tpu_custom_call.1} parent=1 // pred_fallthru
      _
    // Predicated region
    $region38: #{tpu_custom_call.1} parent=1 // pred_check
      _
    $region39: #{tpu_custom_call.1} parent=1 // pred_check_branch
      %80 = sbr.rel (0) target = $region41
    $region40: #{tpu_custom_call.1} parent=1 // pred_region
      %81 = dma.done [#allocation7], 16
    $region41: #{tpu_custom_call.1} parent=1 // pred_fallthru
      _
    // Predicated region
    $region42: #{tpu_custom_call.1} parent=1 // pred_check
      _
    $region43: #{tpu_custom_call.1} parent=1 // pred_check_branch
      %83 = sbr.rel (0) target = $region45
    $region44: #{tpu_custom_call.1} parent=1 // pred_region
      %84 = dma.done [#allocation5], 64
    $region45: #{tpu_custom_call.1} parent=1 // pred_fallthru
      _
    // Predicated region
    $region46: #{tpu_custom_call.1} parent=1 // pred_check
      _
    $region47: #{tpu_custom_call.1} parent=1 // pred_check_branch
      %86 = sbr.rel (0) target = $region49
    $region48: #{tpu_custom_call.1} parent=1 // pred_region
      %87 = dma.done [#allocation10], 64
    $region49: #{tpu_custom_call.1} parent=1 // pred_fallthru
      _
    // Predicated region
    $region50: #{tpu_custom_call.1} parent=1 // pred_check
      _
    $region51: #{tpu_custom_call.1} parent=1 // pred_check_branch
      %89 = sbr.rel (0) target = $region53
    $region52: #{tpu_custom_call.1} parent=1 // pred_region
      %90 = dma.done [#allocation10], 128
    $region53: #{tpu_custom_call.1} parent=1 // pred_fallthru
      _
    // Predicated region
    $region54: #{tpu_custom_call.1} parent=1 // pred_check
      _
    $region55: #{tpu_custom_call.1} parent=1 // pred_check_branch
      %92 = sbr.rel (0) target = $region57
    $region56: #{tpu_custom_call.1} parent=1 // pred_region
      %93 = dma.done [#allocation13], 4096
    $region57: #{tpu_custom_call.1} parent=1 // pred_fallthru
      _
    %94 = sfence
    %96 = vst [vmem:[#allocation2] sm:$0xff] 0.0
    loop: start=0, step=1, limit=4
    $region58: #{tpu_custom_call.1} parent=1 // loop_pre_header
      _
    $region59: #{tpu_custom_call.1} parent=1 // loop_header
      %s98 = sphi 0, %s102
      %p99 = scmp.ge.s32.totalorder %s98, 4
    $region60: #{tpu_custom_call.1} parent=1 // loop_header_branch
      %101 = sbr.rel (%p99) target = $region64
    $region61: #{tpu_custom_call.1} parent=1 // loop_body
      %s103 = sld [smem:[#allocation4 + %s98]]
      %s104 = scalar_lea.vmem [#allocation8], %s98
      %v105 = vld [vmem:[%s104] sm:$0x1]
      %s106 = scalar_lea.vmem [#allocation2], %s103
      %107 = vst [vmem:[%s106] sm:$0x1] %v105
    $region62: #{tpu_custom_call.1} parent=1 // loop_footer
      %s102 = sadd.s32 1, %s98
    $region63: #{tpu_custom_call.1} parent=1 // loop_footer_branch
      %97 = sbr.rel target = $region59
    $region64: #{tpu_custom_call.1} parent=1 // loop_exit
      _
    %v108 = vld [vmem:[#allocation2] sm:$0xff]
    %v109 = vld [vmem:[%s5] sm:$0xff]
    %v110 = vadd.f32 %v109, %v108
    %v111 = vld [vmem:[%s8] sm:$0x1]
    %v112 = vld [vmem:[%s8 + $0x1] sm:$0x1]
    %113 = vadd.xlane.f32.xlu0 %v110
    %v114 = vpop.xlane.xlu0 %113
    %v115 = vrcp.pop 128.0
    %v116 = vmul.f32 %v114, %v115
    %v117 = vsub.f32 %v110, %v116
    %v118 = vmul.f32 %v117, %v117
    %119 = vadd.xlane.f32.xlu0 %v118
    %v120 = vpop.xlane.xlu0 %119
    %v121 = vmul.f32 %v120, %v115
    %v122 = vadd.f32 %v121, 1e-05
    %v123 = vrsqrt.pop %v122
    %v124 = vmul.f32 %v117, %v123
    %v125 = vlaneseq
    %v126 = vshrl.u32 %v125, 7
    %v127 = vsub.s32 0, %v126
    %v128 = vrot.slane %v111, %v127
    %v129 = vmul.f32 %v124, %v128
    %v130 = vlaneseq
    %v131 = vshrl.u32 %v130, 7
    %v132 = vsub.s32 0, %v131
    %v133 = vrot.slane %v112, %v132
    %v134 = vadd.f32 %v129, %v133
    %v135 = vld [vmem:[#allocation9] sm:$0xf]
    %v136 = vpack.c.bf16 %v134, %v134
    %vm137 = vcmask 64512
    %v139 = vsel %vm137, %v135, 0
    %vm141 = vcmask 1043456
    %v143 = vsel %vm141, %v136, 0
    %145 = vmatprep.subr.bf16.mxu0 0
    %146 = vmatpush1.bf16.msra.mxu0 %v143
    %147 = vmatprep.subr.bf16.mxu0 0
    %148 = vmatpush1.bf16.msra.mxu0 0
    %149 = vmatprep.subr.bf16.mxu0 0
    %150 = vmatpush1.bf16.msra.mxu0 0
    %151 = vmatprep.subr.bf16.mxu0 0
    %152 = vmatpush1.bf16.msra.mxu0 0
    %153 = vmatprep.subr.bf16.mxu0 0
    %154 = vmatpush1.bf16.msra.mxu0 0
    %155 = vmatprep.subr.bf16.mxu0 0
    %156 = vmatpush1.bf16.msra.mxu0 0
    %157 = vmatprep.subr.bf16.mxu0 0
    %158 = vmatpush1.bf16.msra.mxu0 0
    %159 = vmatprep.subr.bf16.mxu0 0
    %160 = vmatpush1.bf16.msra.mxu0 0
    %161 = vmatprep.subr.bf16.mxu0 0
    %162 = vmatpush1.bf16.msra.mxu0 0
    %163 = vmatprep.subr.bf16.mxu0 0
    %164 = vmatpush1.bf16.msra.mxu0 0
    %165 = vmatprep.subr.bf16.mxu0 0
    %166 = vmatpush1.bf16.msra.mxu0 0
    %167 = vmatprep.subr.bf16.mxu0 0
    %168 = vmatpush1.bf16.msra.mxu0 0
    %169 = vmatprep.subr.bf16.mxu0 0
    %170 = vmatpush1.bf16.msra.mxu0 0
    %171 = vmatprep.subr.bf16.mxu0 0
    %172 = vmatpush1.bf16.msra.mxu0 0
    %173 = vmatprep.subr.bf16.mxu0 0
    %174 = vmatpush1.bf16.msra.mxu0 0
    %175 = vmatprep.subr.bf16.mxu0 0
    %176 = vmatpush1.bf16.msra.mxu0 0
    %177 = vmatprep.mubr.bf16.mxu0 0
    %178 = vmatmul.mubr.bf16.gmra.mrb[0].mxu0 %v139
    %v179 = vpop.f32.mrb[0].mxu0
    %v180 = vadd.f32 0.0, %v179
    %v181 = vpop.f32.mrb[0].mxu0
    %v182 = vpop.f32.mrb[0].mxu0
    %v183 = vpop.f32.mrb[0].mxu0
    %184 = vdwg.mxu0
    %v185 = vld [vmem:[%s6] sm:$0xff]
    %187 = vset.pattern.permute.xlu0 0
    %188 = vperm.xlu0 %187, %v185
    %v189 = vpop.permute.xlu0 %188
    %v191 = vmul.f32 %v180, %v189
    %v192 = vld [vmem:[#allocation12] sm:$0xff]
    %v193 = vld [vmem:[#allocation12 + $0x8] sm:$0xff]
    %v194 = vld [vmem:[#allocation12 + $0x10] sm:$0xff]
    %v195 = vld [vmem:[#allocation12 + $0x18] sm:$0xff]
    %v196 = vld [vmem:[#allocation12 + $0x20] sm:$0xff]
    %v197 = vld [vmem:[#allocation12 + $0x28] sm:$0xff]
    %v198 = vld [vmem:[#allocation12 + $0x30] sm:$0xff]
    %v199 = vld [vmem:[#allocation12 + $0x38] sm:$0xff]
    %v200 = vld [vmem:[#allocation12 + $0x40] sm:$0xff]
    %v201 = vld [vmem:[#allocation12 + $0x48] sm:$0xff]
    %v202 = vld [vmem:[#allocation12 + $0x50] sm:$0xff]
    %v203 = vld [vmem:[#allocation12 + $0x58] sm:$0xff]
    %v204 = vld [vmem:[#allocation12 + $0x60] sm:$0xff]
    %v205 = vld [vmem:[#allocation12 + $0x68] sm:$0xff]
    %v206 = vld [vmem:[#allocation12 + $0x70] sm:$0xff]
    %v207 = vld [vmem:[#allocation12 + $0x78] sm:$0xff]
    %v208 = vld [vmem:[%s8 + $0x2] sm:$0x1]
    %v209 = vlaneseq
    %v210 = vshrl.u32 %v209, 7
    %v211 = vsub.s32 0, %v210
    %v212 = vrot.slane %v208, %v211
    %213 = vmatprep.subr.mxu0 0.0
    %214 = vmatpush1.msra.mxu0 %v192
    %215 = vmatprep.subr.mxu0 0.0
    %216 = vmatpush1.msra.mxu0 %v193
    %217 = vmatprep.subr.mxu0 0.0
    %218 = vmatpush1.msra.mxu0 %v194
    %219 = vmatprep.subr.mxu0 0.0
    %220 = vmatpush1.msra.mxu0 %v195
    %221 = vmatprep.subr.mxu0 0.0
    %222 = vmatpush1.msra.mxu0 %v196
    %223 = vmatprep.subr.mxu0 0.0
    %224 = vmatpush1.msra.mxu0 %v197
    %225 = vmatprep.subr.mxu0 0.0
    %226 = vmatpush1.msra.mxu0 %v198
    %227 = vmatprep.subr.mxu0 0.0
    %228 = vmatpush1.msra.mxu0 %v199
    %229 = vmatprep.subr.mxu0 0.0
    %230 = vmatpush1.msra.mxu0 %v200
    %231 = vmatprep.subr.mxu0 0.0
    %232 = vmatpush1.msra.mxu0 %v201
    %233 = vmatprep.subr.mxu0 0.0
    %234 = vmatpush1.msra.mxu0 %v202
    %235 = vmatprep.subr.mxu0 0.0
    %236 = vmatpush1.msra.mxu0 %v203
    %237 = vmatprep.subr.mxu0 0.0
    %238 = vmatpush1.msra.mxu0 %v204
    %239 = vmatprep.subr.mxu0 0.0
    %240 = vmatpush1.msra.mxu0 %v205
    %241 = vmatprep.subr.mxu0 0.0
    %242 = vmatpush1.msra.mxu0 %v206
    %243 = vmatprep.subr.mxu0 0.0
    %244 = vmatpush1.msra.mxu0 %v207
    %245 = vmatprep.subr.mxu0 0.0
    %246 = vmatpush1.msra.mxu0 0.0
    %247 = vmatprep.subr.mxu0 0.0
    %248 = vmatpush1.msra.mxu0 0.0
    %249 = vmatprep.subr.mxu0 0.0
    %250 = vmatpush1.msra.mxu0 0.0
    %251 = vmatprep.subr.mxu0 0.0
    %252 = vmatpush1.msra.mxu0 0.0
    %253 = vmatprep.subr.mxu0 0.0
    %254 = vmatpush1.msra.mxu0 0.0
    %255 = vmatprep.subr.mxu0 0.0
    %256 = vmatpush1.msra.mxu0 0.0
    %257 = vmatprep.subr.mxu0 0.0
    %258 = vmatpush1.msra.mxu0 0.0
    %259 = vmatprep.subr.mxu0 0.0
    %260 = vmatpush1.msra.mxu0 0.0
    %261 = vmatprep.subr.mxu0 0.0
    %262 = vmatpush1.msra.mxu0 0.0
    %263 = vmatprep.subr.mxu0 0.0
    %264 = vmatpush1.msra.mxu0 0.0
    %265 = vmatprep.subr.mxu0 0.0
    %266 = vmatpush1.msra.mxu0 0.0
    %267 = vmatprep.subr.mxu0 0.0
    %268 = vmatpush1.msra.mxu0 0.0
    %269 = vmatprep.subr.mxu0 0.0
    %270 = vmatpush1.msra.mxu0 0.0
    %271 = vmatprep.subr.mxu0 0.0
    %272 = vmatpush1.msra.mxu0 0.0
    %273 = vmatprep.subr.mxu0 0.0
    %274 = vmatpush1.msra.mxu0 0.0
    %275 = vmatprep.subr.mxu0 0.0
    %276 = vmatpush1.msra.mxu0 0.0
    %277 = vmatprep.mubr.f32.mxu0 0.0
    %278 = vmatmul.mubr.f32.gmra.mrb[0].mxu0 %v191
    %v279 = vpop.f32.mrb[0].mxu0
    %v280 = vadd.f32 %v212, %v279
    %v281 = vpop.f32.mrb[0].mxu0
    %282 = vdwg.mxu0
    %v283 = vmax.f32 %v280, 0.0
    %v284 = vadd.f32 %v283, %v134
    %v285 = vld [vmem:[%s8 + $0x3] sm:$0x1]
    %v286 = vld [vmem:[%s8 + $0x4] sm:$0x1]
    %287 = vadd.xlane.f32.xlu0 %v284
    %v288 = vpop.xlane.xlu0 %287
    %v289 = vmul.f32 %v288, %v115
    %v290 = vsub.f32 %v284, %v289
    %v291 = vmul.f32 %v290, %v290
    %292 = vadd.xlane.f32.xlu0 %v291
    %v293 = vpop.xlane.xlu0 %292
    %v294 = vmul.f32 %v293, %v115
    %v295 = vadd.f32 %v294, 1e-05
    %v296 = vrsqrt.pop %v295
    %v297 = vmul.f32 %v290, %v296
    %v298 = vlaneseq
    %v299 = vshrl.u32 %v298, 7
    %v300 = vsub.s32 0, %v299
    %v301 = vrot.slane %v285, %v300
    %v302 = vmul.f32 %v297, %v301
    %v303 = vlaneseq
    %v304 = vshrl.u32 %v303, 7
    %v305 = vsub.s32 0, %v304
    %v306 = vrot.slane %v286, %v305
    %v307 = vadd.f32 %v302, %v306
    %308 = vst [vmem:[#allocation3] sm:$0xff] %v307
    %309 = vst [vmem:[#allocation2] sm:$0xff] 0.0
    %310 = vst [vmem:[#allocation2 + $0x8] sm:$0xff] 0.0
    loop: start=0, step=1, limit=8
    $region65: #{tpu_custom_call.1} parent=1 // loop_pre_header
      _
    $region66: #{tpu_custom_call.1} parent=1 // loop_header
      %s312 = sphi 0, %s316
      %p313 = scmp.ge.s32.totalorder %s312, 8
    $region67: #{tpu_custom_call.1} parent=1 // loop_header_branch
      %315 = sbr.rel (%p313) target = $region71
    $region68: #{tpu_custom_call.1} parent=1 // loop_body
      %s317 = sadd.s32 %s312, 4
      %s318 = sld [smem:[#allocation4 + %s317]]
      %s319 = scalar_lea.vmem [#allocation3], %s312
      %v320 = vld [vmem:[%s319] sm:$0x1]
      %s321 = scalar_lea.vmem [#allocation2], %s318
      %322 = vst [vmem:[%s321] sm:$0x1] %v320
    $region69: #{tpu_custom_call.1} parent=1 // loop_footer
      %s316 = sadd.s32 1, %s312
    $region70: #{tpu_custom_call.1} parent=1 // loop_footer_branch
      %311 = sbr.rel target = $region66
    $region71: #{tpu_custom_call.1} parent=1 // loop_exit
      _
    %v323 = vld [vmem:[#allocation2] sm:$0xff]
    %v324 = vld [vmem:[#allocation2 + $0x8] sm:$0xff]
    %s325 = scalar_lea.vmem %s5, 16
    %v326 = vld [vmem:[%s325] sm:$0xff]
    %v327 = vld [vmem:[%s325 + $0x8] sm:$0xff]
    %v328 = vadd.f32 %v326, %v323
    %v329 = vadd.f32 %v327, %v324
    %v330 = vld [vmem:[%s8 + $0x5] sm:$0x1]
    %v331 = vld [vmem:[%s8 + $0x6] sm:$0x1]
    %332 = vadd.xlane.f32.xlu0 %v328
    %v333 = vpop.xlane.xlu0 %332
    %334 = vadd.xlane.f32.xlu0 %v329
    %v335 = vpop.xlane.xlu0 %334
    %v336 = vmul.f32 %v333, %v115
    %v337 = vmul.f32 %v335, %v115
    %v338 = vsub.f32 %v328, %v336
    %v339 = vsub.f32 %v329, %v337
    %v340 = vmul.f32 %v338, %v338
    %v341 = vmul.f32 %v339, %v339
    %342 = vadd.xlane.f32.xlu0 %v340
    %v343 = vpop.xlane.xlu0 %342
    %344 = vadd.xlane.f32.xlu0 %v341
    %v345 = vpop.xlane.xlu0 %344
    %v346 = vmul.f32 %v343, %v115
    %v347 = vmul.f32 %v345, %v115
    %v348 = vadd.f32 %v346, 1e-05
    %v349 = vadd.f32 %v347, 1e-05
    %v350 = vrsqrt.pop %v348
    %v351 = vrsqrt.pop %v349
    %v352 = vmul.f32 %v338, %v350
    %v353 = vmul.f32 %v339, %v351
    %v354 = vlaneseq
    %v355 = vshrl.u32 %v354, 7
    %v356 = vsub.s32 0, %v355
    %v357 = vrot.slane %v330, %v356
    %v358 = vmul.f32 %v352, %v357
    %v359 = vmul.f32 %v353, %v357
    %v360 = vlaneseq
    %v361 = vshrl.u32 %v360, 7
    %v362 = vsub.s32 0, %v361
    %v363 = vrot.slane %v331, %v362
    %v364 = vadd.f32 %v358, %v363
    %v365 = vadd.f32 %v359, %v363
    %v366 = vld [vmem:[#allocation11] sm:$0xf]
    %v367 = vld [vmem:[#allocation11 + $0x4] sm:$0xf]
    %v368 = vpack.c.bf16 %v365, %v364
    %v371 = vunpack.c.l.b16 %v366
    %v372 = vunpack.c.l.b16 %v367
    %v373 = vpack.c.b16 %v372, %v371
    %vm374 = vcmask 130048
    %v376 = vsel %vm374, %v373, 0
    %378 = vmatprep.subr.bf16.mxu0 0
    %379 = vmatpush1.bf16.msra.mxu0 %v368
    %380 = vmatprep.subr.bf16.mxu0 0
    %381 = vmatpush1.bf16.msra.mxu0 0
    %382 = vmatprep.subr.bf16.mxu0 0
    %383 = vmatpush1.bf16.msra.mxu0 0
    %384 = vmatprep.subr.bf16.mxu0 0
    %385 = vmatpush1.bf16.msra.mxu0 0
    %386 = vmatprep.subr.bf16.mxu0 0
    %387 = vmatpush1.bf16.msra.mxu0 0
    %388 = vmatprep.subr.bf16.mxu0 0
    %389 = vmatpush1.bf16.msra.mxu0 0
    %390 = vmatprep.subr.bf16.mxu0 0
    %391 = vmatpush1.bf16.msra.mxu0 0
    %392 = vmatprep.subr.bf16.mxu0 0
    %393 = vmatpush1.bf16.msra.mxu0 0
    %394 = vmatprep.subr.bf16.mxu0 0
    %395 = vmatpush1.bf16.msra.mxu0 0
    %396 = vmatprep.subr.bf16.mxu0 0
    %397 = vmatpush1.bf16.msra.mxu0 0
    %398 = vmatprep.subr.bf16.mxu0 0
    %399 = vmatpush1.bf16.msra.mxu0 0
    %400 = vmatprep.subr.bf16.mxu0 0
    %401 = vmatpush1.bf16.msra.mxu0 0
    %402 = vmatprep.subr.bf16.mxu0 0
    %403 = vmatpush1.bf16.msra.mxu0 0
    %404 = vmatprep.subr.bf16.mxu0 0
    %405 = vmatpush1.bf16.msra.mxu0 0
    %406 = vmatprep.subr.bf16.mxu0 0
    %407 = vmatpush1.bf16.msra.mxu0 0
    %408 = vmatprep.subr.bf16.mxu0 0
    %409 = vmatpush1.bf16.msra.mxu0 0
    %410 = vmatprep.mubr.bf16.mxu0 0
    %411 = vmatmul.mubr.bf16.gmra.mrb[0].mxu0 %v376
    %v412 = vpop.f32.mrb[0].mxu0
    %v413 = vadd.f32 0.0, %v412
    %v414 = vpop.f32.mrb[0].mxu0
    %v415 = vpop.f32.mrb[0].mxu0
    %v416 = vadd.f32 0.0, %v415
    %v417 = vpop.f32.mrb[0].mxu0
    %418 = vdwg.mxu0
    %s419 = scalar_lea.vmem %s6, 16
    %v420 = vld [vmem:[%s419] sm:$0xff]
    %v421 = vld [vmem:[%s419 + $0x8] sm:$0xff]
    %423 = vset.pattern.permute.xlu0 0
    %424 = vperm.xlu0 %423, %v420
    %v425 = vpop.permute.xlu0 %424
    %428 = vset.pattern.permute.xlu0 0
    %429 = vperm.xlu0 %428, %v421
    %v430 = vpop.permute.xlu0 %429
    %v432 = vmul.f32 %v413, %v425
    %v433 = vmul.f32 %v416, %v430
    %s434 = scalar_lea.vmem [#allocation12], 128
    %v435 = vld [vmem:[%s434] sm:$0xff]
    %v436 = vld [vmem:[%s434 + $0x8] sm:$0xff]
    %v437 = vld [vmem:[%s434 + $0x10] sm:$0xff]
    %v438 = vld [vmem:[%s434 + $0x18] sm:$0xff]
    %v439 = vld [vmem:[%s434 + $0x20] sm:$0xff]
    %v440 = vld [vmem:[%s434 + $0x28] sm:$0xff]
    %v441 = vld [vmem:[%s434 + $0x30] sm:$0xff]
    %v442 = vld [vmem:[%s434 + $0x38] sm:$0xff]
    %v443 = vld [vmem:[%s434 + $0x40] sm:$0xff]
    %v444 = vld [vmem:[%s434 + $0x48] sm:$0xff]
    %v445 = vld [vmem:[%s434 + $0x50] sm:$0xff]
    %v446 = vld [vmem:[%s434 + $0x58] sm:$0xff]
    %v447 = vld [vmem:[%s434 + $0x60] sm:$0xff]
    %v448 = vld [vmem:[%s434 + $0x68] sm:$0xff]
    %v449 = vld [vmem:[%s434 + $0x70] sm:$0xff]
    %v450 = vld [vmem:[%s434 + $0x78] sm:$0xff]
    %v451 = vld [vmem:[%s8 + $0x7] sm:$0x1]
    %v452 = vlaneseq
    %v453 = vshrl.u32 %v452, 7
    %v454 = vsub.s32 0, %v453
    %v455 = vrot.slane %v451, %v454
    %456 = vmatprep.subr.mxu0 0.0
    %457 = vmatpush1.msra.mxu0 %v435
    %458 = vmatprep.subr.mxu0 0.0
    %459 = vmatpush1.msra.mxu0 %v436
    %460 = vmatprep.subr.mxu0 0.0
    %461 = vmatpush1.msra.mxu0 %v437
    %462 = vmatprep.subr.mxu0 0.0
    %463 = vmatpush1.msra.mxu0 %v438
    %464 = vmatprep.subr.mxu0 0.0
    %465 = vmatpush1.msra.mxu0 %v439
    %466 = vmatprep.subr.mxu0 0.0
    %467 = vmatpush1.msra.mxu0 %v440
    %468 = vmatprep.subr.mxu0 0.0
    %469 = vmatpush1.msra.mxu0 %v441
    %470 = vmatprep.subr.mxu0 0.0
    %471 = vmatpush1.msra.mxu0 %v442
    %472 = vmatprep.subr.mxu0 0.0
    %473 = vmatpush1.msra.mxu0 %v443
    %474 = vmatprep.subr.mxu0 0.0
    %475 = vmatpush1.msra.mxu0 %v444
    %476 = vmatprep.subr.mxu0 0.0
    %477 = vmatpush1.msra.mxu0 %v445
    %478 = vmatprep.subr.mxu0 0.0
    %479 = vmatpush1.msra.mxu0 %v446
    %480 = vmatprep.subr.mxu0 0.0
    %481 = vmatpush1.msra.mxu0 %v447
    %482 = vmatprep.subr.mxu0 0.0
    %483 = vmatpush1.msra.mxu0 %v448
    %484 = vmatprep.subr.mxu0 0.0
    %485 = vmatpush1.msra.mxu0 %v449
    %486 = vmatprep.subr.mxu0 0.0
    %487 = vmatpush1.msra.mxu0 %v450
    %488 = vmatprep.subr.mxu0 0.0
    %489 = vmatpush1.msra.mxu0 0.0
    %490 = vmatprep.subr.mxu0 0.0
    %491 = vmatpush1.msra.mxu0 0.0
    %492 = vmatprep.subr.mxu0 0.0
    %493 = vmatpush1.msra.mxu0 0.0
    %494 = vmatprep.subr.mxu0 0.0
    %495 = vmatpush1.msra.mxu0 0.0
    %496 = vmatprep.subr.mxu0 0.0
    %497 = vmatpush1.msra.mxu0 0.0
    %498 = vmatprep.subr.mxu0 0.0
    %499 = vmatpush1.msra.mxu0 0.0
    %500 = vmatprep.subr.mxu0 0.0
    %501 = vmatpush1.msra.mxu0 0.0
    %502 = vmatprep.subr.mxu0 0.0
    %503 = vmatpush1.msra.mxu0 0.0
    %504 = vmatprep.subr.mxu0 0.0
    %505 = vmatpush1.msra.mxu0 0.0
    %506 = vmatprep.subr.mxu0 0.0
    %507 = vmatpush1.msra.mxu0 0.0
    %508 = vmatprep.subr.mxu0 0.0
    %509 = vmatpush1.msra.mxu0 0.0
    %510 = vmatprep.subr.mxu0 0.0
    %511 = vmatpush1.msra.mxu0 0.0
    %512 = vmatprep.subr.mxu0 0.0
    %513 = vmatpush1.msra.mxu0 0.0
    %514 = vmatprep.subr.mxu0 0.0
    %515 = vmatpush1.msra.mxu0 0.0
    %516 = vmatprep.subr.mxu0 0.0
    %517 = vmatpush1.msra.mxu0 0.0
    %518 = vmatprep.subr.mxu0 0.0
    %519 = vmatpush1.msra.mxu0 0.0
    %520 = vmatprep.mubr.f32.mxu0 0.0
    %521 = vmatmul.mubr.f32.gmra.mrb[0].mxu0 %v432
    %v522 = vpop.f32.mrb[0].mxu0
    %v523 = vadd.f32 %v455, %v522
    %v524 = vpop.f32.mrb[0].mxu0
    %525 = vmatprep.mubr.f32.mxu0 0.0
    %526 = vmatmul.mubr.f32.gmra.mrb[0].mxu0 %v433
    %v527 = vpop.f32.mrb[0].mxu0
    %v528 = vadd.f32 %v455, %v527
    %v529 = vpop.f32.mrb[0].mxu0
    %530 = vdwg.mxu0
    %v531 = vmax.f32 %v523, 0.0
    %v532 = vmax.f32 %v528, 0.0
    %v533 = vadd.f32 %v531, %v364
    %v534 = vadd.f32 %v532, %v365
    %v535 = vld [vmem:[%s8 + $0x8] sm:$0x1]
    %v536 = vld [vmem:[%s8 + $0x9] sm:$0x1]
    %537 = vadd.xlane.f32.xlu0 %v533
    %v538 = vpop.xlane.xlu0 %537
    %539 = vadd.xlane.f32.xlu0 %v534
    %v540 = vpop.xlane.xlu0 %539
    %v541 = vmul.f32 %v538, %v115
    %v542 = vmul.f32 %v540, %v115
    %v543 = vsub.f32 %v533, %v541
    %v544 = vsub.f32 %v534, %v542
    %v545 = vmul.f32 %v543, %v543
    %v546 = vmul.f32 %v544, %v544
    %547 = vadd.xlane.f32.xlu0 %v545
    %v548 = vpop.xlane.xlu0 %547
    %549 = vadd.xlane.f32.xlu0 %v546
    %v550 = vpop.xlane.xlu0 %549
    %v551 = vmul.f32 %v548, %v115
    %v552 = vmul.f32 %v550, %v115
    %v553 = vadd.f32 %v551, 1e-05
    %v554 = vadd.f32 %v552, 1e-05
    %v555 = vrsqrt.pop %v553
    %v556 = vrsqrt.pop %v554
    %v557 = vmul.f32 %v543, %v555
    %v558 = vmul.f32 %v544, %v556
    %v559 = vlaneseq
    %v560 = vshrl.u32 %v559, 7
    %v561 = vsub.s32 0, %v560
    %v562 = vrot.slane %v535, %v561
    %v563 = vmul.f32 %v557, %v562
    %v564 = vmul.f32 %v558, %v562
    %v565 = vlaneseq
    %v566 = vshrl.u32 %v565, 7
    %v567 = vsub.s32 0, %v566
    %v568 = vrot.slane %v536, %v567
    %v569 = vadd.f32 %v563, %v568
    %v570 = vadd.f32 %v564, %v568
    %v571 = vld [vmem:[%s2] sm:$0xff]
    %v572 = vld [vmem:[%s2 + $0x8] sm:$0xff]
    %v573 = vadd.f32 %v569, %v571
    %v574 = vadd.f32 %v570, %v572
    %v575 = vld [vmem:[%s8 + $0xa] sm:$0x1]
    %v576 = vld [vmem:[%s8 + $0xb] sm:$0x1]
    %577 = vadd.xlane.f32.xlu0 %v573
    %v578 = vpop.xlane.xlu0 %577
    %579 = vadd.xlane.f32.xlu0 %v574
    %v580 = vpop.xlane.xlu0 %579
    %v581 = vmul.f32 %v578, %v115
    %v582 = vmul.f32 %v580, %v115
    %v583 = vsub.f32 %v573, %v581
    %v584 = vsub.f32 %v574, %v582
    %v585 = vmul.f32 %v583, %v583
    %v586 = vmul.f32 %v584, %v584
    %587 = vadd.xlane.f32.xlu0 %v585
    %v588 = vpop.xlane.xlu0 %587
    %589 = vadd.xlane.f32.xlu0 %v586
    %v590 = vpop.xlane.xlu0 %589
    %v591 = vmul.f32 %v588, %v115
    %v592 = vmul.f32 %v590, %v115
    %v593 = vadd.f32 %v591, 1e-05
    %v594 = vadd.f32 %v592, 1e-05
    %v595 = vrsqrt.pop %v593
    %v596 = vrsqrt.pop %v594
    %v597 = vmul.f32 %v583, %v595
    %v598 = vmul.f32 %v584, %v596
    %v599 = vlaneseq
    %v600 = vshrl.u32 %v599, 7
    %v601 = vsub.s32 0, %v600
    %v602 = vrot.slane %v575, %v601
    %v603 = vmul.f32 %v597, %v602
    %v604 = vmul.f32 %v598, %v602
    %v605 = vlaneseq
    %v606 = vshrl.u32 %v605, 7
    %v607 = vsub.s32 0, %v606
    %v608 = vrot.slane %v576, %v607
    %v609 = vadd.f32 %v603, %v608
    %v610 = vadd.f32 %v604, %v608
    %611 = vst [vmem:[#allocation14] sm:$0xff] %v609
    %612 = vst [vmem:[#allocation14 + $0x8] sm:$0xff] %v610
    // Predicated region
    $region72: #{tpu_custom_call.1} parent=1 // pred_check
      _
    $region73: #{tpu_custom_call.1} parent=1 // pred_check_branch
      %614 = sbr.rel (0) target = $region75
    $region74: #{tpu_custom_call.1} parent=1 // pred_region
      %s616 = ssub.s32 256, 256
      %617 = vsyncadd [#allocation6], %s616
      %s618 = sshll.u32 [#allocation14], 4
      %s619 = int_to_ptr.vmem [resolvable:$true] %s618
      %624 = dma.vmem_to_hbm [thread:$0]  %s619, 256, %s9, [#allocation6], 128, 128, 8
    $region75: #{tpu_custom_call.1} parent=1 // pred_fallthru
      _
    // Predicated region
    $region76: #{tpu_custom_call.1} parent=1 // pred_check
      _
    $region77: #{tpu_custom_call.1} parent=1 // pred_check_branch
      %626 = sbr.rel (0) target = $region79
    $region78: #{tpu_custom_call.1} parent=1 // pred_region
      %627 = dma.done [#allocation6], 256
    $region79: #{tpu_custom_call.1} parent=1 // pred_fallthru
      _
    %628 = vsyncpa [#allocation5], 1
    %629 = vsyncpa [#allocation10], 1
    %630 = vsyncpa [#allocation13], 1
    %631 = vsyncpa [#allocation6], 1
    %632 = vsyncpa [#allocation7], 1

</llo_original>
